<compile_context>
chip_gen: v6e
topology: v6e:2x2x1
jax: 0.10.0
libtpu: 0.0.40
codegen_flags: <defaults>
</compile_context>

<pallas_src>
import functools
import math

import jax
import jax.numpy as jnp
from jax.experimental import pallas as pl
from jax.experimental.pallas import tpu as pltpu


# ----------------------------- helpers --------------------------------------


def _round_up(x, m):
    return ((x + m - 1) // m) * m


def _sublane(dtype):
    # min second-to-last tile dim: f32 -> 8, bf16/f16 -> 16, int8/fp8 -> 32
    return {4: 8, 2: 16, 1: 32}.get(jnp.dtype(dtype).itemsize, 8)


def _row_tiling(rows, tm, dtype):
    sub = _sublane(dtype)
    tm_eff = min(tm, _round_up(rows, sub))
    tm_eff = _round_up(tm_eff, sub)
    rows_p = _round_up(rows, tm_eff)
    return tm_eff, rows_p


def _pad_rows(x2, rows_p):
    rows = x2.shape[0]
    if rows_p == rows:
        return x2
    return jnp.pad(x2, ((0, rows_p - rows), (0, 0)))


def _vmem_limit(bytes_needed):
    # Per-call budget: actual buffers + headroom; never below the 32 MiB scoped
    # default, capped at 96 MiB (only reached with very large tiles on v6e).
    return int(min(max(bytes_needed + (4 << 20), 32 << 20), 96 << 20))


def _head_group_width(num_heads, head_dim):
    """#heads packed per attention block so the lane dim is a multiple of 128."""
    if head_dim % 128 == 0:
        return 1
    if 128 % head_dim == 0:
        hp = 128 // head_dim
        if num_heads % hp == 0:
            return hp
    # fall back: whole hidden width per block (full last dim -> always legal)
    return num_heads


# ------------------------- fused QKV projection ------------------------------


def _qkv_kernel(h_ref, w_ref, b_ref, q_ref, k_ref, v_ref, *, hidden):
    # One fused (tm, H) @ (H, 3H) MXU pass in the operands' native dtype with
    # f32 accumulation; bias added in f32; three lane-dense (tm, H) stores.
    y = jnp.dot(h_ref[...], w_ref[...], preferred_element_type=jnp.float32)
    y = y + b_ref[...].astype(jnp.float32)
    q_ref[...] = y[:, :hidden].astype(q_ref.dtype)
    k_ref[...] = y[:, hidden:2 * hidden].astype(k_ref.dtype)
    v_ref[...] = y[:, 2 * hidden:].astype(v_ref.dtype)


def _qkv_proj(h2, w_qkv, b_qkv, *, tm):
    rows, H = h2.shape
    H3 = w_qkv.shape[1]
    tm_eff, rows_p = _row_tiling(rows, tm, h2.dtype)
    h2p = _pad_rows(h2, rows_p)
    itm = jnp.dtype(h2.dtype).itemsize
    w_bytes = H * H3 * jnp.dtype(w_qkv.dtype).itemsize
    need = (2 * tm_eff * H * itm           # activation tile, double buffered
            + 3 * 2 * tm_eff * H * itm     # q/k/v output tiles, double buffered
            + w_bytes + 2 * H3 * 4         # resident weight + bias
            + 4 * tm_eff * H3)             # f32 intermediate
    kern = functools.partial(_qkv_kernel, hidden=H)

    def build(single_buffer_weights):
        res = dict(pipeline_mode=pl.Buffered(1)) if single_buffer_weights else {}
        out_spec = pl.BlockSpec((tm_eff, H), lambda i: (i, 0))
        return pl.pallas_call(
            kern,
            out_shape=tuple(jax.ShapeDtypeStruct((rows_p, H), h2.dtype)
                            for _ in range(3)),
            grid_spec=pltpu.PrefetchScalarGridSpec(
                num_scalar_prefetch=0,
                grid=(rows_p // tm_eff,),
                in_specs=[
                    pl.BlockSpec((tm_eff, H), lambda i: (i, 0)),
                    pl.BlockSpec((H, H3), lambda i: (0, 0), **res),   # resident weight
                    pl.BlockSpec((1, H3), lambda i: (0, 0), **res),   # resident bias
                ],
                out_specs=(out_spec, out_spec, out_spec),
            ),
            compiler_params=pltpu.CompilerParams(
                dimension_semantics=("parallel",),
                vmem_limit_bytes=_vmem_limit(
                    need + (0 if single_buffer_weights else w_bytes))),
        )

    try:
        q, k, v = build(True)(h2p, w_qkv, b_qkv)
    except Exception:   # Buffered(1) unsupported in this build -> default buffering
        q, k, v = build(False)(h2p, w_qkv, b_qkv)
    return q[:rows], k[:rows], v[:rows]


# --------------------- scaled dot-product attention core ---------------------


def _attention_kernel(q_ref, k_ref, v_ref, m_ref, o_ref, *, scale, heads, head_dim):
    mask = m_ref[...].astype(jnp.float32)            # (1, S), broadcast over queries
    q = q_ref[...]                                   # (S, heads*head_dim), native dtype
    k = k_ref[...]
    v = v_ref[...]
    ctxs = []
    for h in range(heads):                           # static, unrolled per-head loop
        sl = slice(h * head_dim, (h + 1) * head_dim)
        # pre-scale the (S, d) query tile instead of the (S, S) score matrix
        qh = q[:, sl] * scale
        s = jax.lax.dot_general(qh, k[:, sl], (((1,), (1,)), ((), ())),
                                preferred_element_type=jnp.float32)
        s = jnp.clip(s, -10000.0, 10000.0) + mask
        # softmax over keys in f32 (matches F.softmax(scores.float(), -1))
        s = s - jnp.max(s, axis=-1, keepdims=True)
        e = jnp.exp(s)
        p = e * pl.reciprocal(jnp.sum(e, axis=-1, keepdims=True), approx=True)
        # TODO(synk): attention-probs dropout not applied (inference identity).
        ctxs.append(jnp.dot(p.astype(v.dtype), v[:, sl],
                            preferred_element_type=jnp.float32))
    ctx = ctxs[0] if heads == 1 else jnp.concatenate(ctxs, axis=-1)
    o_ref[...] = ctx.astype(o_ref.dtype)             # single lane-dense store


def _attention_core(q, k, v, mask3, *, scale, num_heads):
    B, S, H = q.shape
    d = H // num_heads
    hp = _head_group_width(num_heads, d)             # heads per grid step
    W = hp * d                                       # lane width of each block
    n_hg = H // W
    itm = jnp.dtype(q.dtype).itemsize
    need = (4 * 2 * S * W * itm                      # q/k/v/out blocks, double buffered
            + 2 * S * 4                              # mask
            + 2 * S * S * 4 + hp * S * d * 4)        # f32 scores + per-head contexts
    kern = functools.partial(_attention_kernel, scale=scale, heads=hp, head_dim=d)
    qkv_spec = pl.BlockSpec((None, S, W), lambda b, g: (b, 0, g))
    return pl.pallas_call(
        kern,
        out_shape=jax.ShapeDtypeStruct((B, S, H), q.dtype),
        grid_spec=pltpu.PrefetchScalarGridSpec(
            num_scalar_prefetch=0,
            grid=(B, n_hg),
            in_specs=[
                qkv_spec,                                             # Q head-group
                pl.BlockSpec((None, S, W), lambda b, g: (b, 0, g)),   # K head-group
                pl.BlockSpec((None, S, W), lambda b, g: (b, 0, g)),   # V head-group
                pl.BlockSpec((None, 1, S), lambda b, g: (b, 0, 0)),   # additive mask (f32)
            ],
            out_specs=pl.BlockSpec((None, S, W), lambda b, g: (b, 0, g)),
        ),
        compiler_params=pltpu.CompilerParams(
            dimension_semantics=("parallel", "parallel"),
            vmem_limit_bytes=_vmem_limit(need)),
    )(q, k, v, mask3)


# ------------------ BertSelfOutput: dense + residual + LN --------------------


def _self_output_kernel(h_ref, x_ref, w_ref, b_ref, g_ref, beta_ref, o_ref):
    # dense in the operands' native dtype (bf16-native MXU on v6e/v7x), f32 acc
    y = jnp.dot(h_ref[...], w_ref[...], preferred_element_type=jnp.float32)
    # TODO(synk): hidden dropout not applied (inference identity).
    z = y + b_ref[...].astype(jnp.float32) + x_ref[...].astype(jnp.float32)
    # BertLayerNorm in f32 (TF style: eps inside the sqrt), reduce over last dim
    u = jnp.mean(z, axis=-1, keepdims=True)
    dz = z - u
    var = jnp.mean(dz * dz, axis=-1, keepdims=True)
    inv = jax.lax.rsqrt(var + 1e-12)
    g = g_ref[...].astype(jnp.float32)
    be = beta_ref[...].astype(jnp.float32)
    o_ref[...] = (dz * (inv * g) + be).astype(o_ref.dtype)


def _self_output(h2, x2, w_t, b2, g2, be2, *, tm):
    rows, H = h2.shape
    tm_eff, rows_p = _row_tiling(rows, tm, h2.dtype)
    h2p = _pad_rows(h2, rows_p)
    x2p = _pad_rows(x2, rows_p)
    itm = jnp.dtype(h2.dtype).itemsize
    w_bytes = H * H * jnp.dtype(w_t.dtype).itemsize
    need = (2 * 2 * tm_eff * H * itm       # context + residual tiles, double buffered
            + 2 * tm_eff * H * itm         # output tile, double buffered
            + w_bytes + 3 * H * 4 * 2      # resident weight + bias/gamma/beta
            + 4 * tm_eff * H)              # f32 intermediate

    def build(single_buffer_weights):
        res = dict(pipeline_mode=pl.Buffered(1)) if single_buffer_weights else {}
        return pl.pallas_call(
            _self_output_kernel,
            out_shape=jax.ShapeDtypeStruct((rows_p, H), h2.dtype),
            grid_spec=pltpu.PrefetchScalarGridSpec(
                num_scalar_prefetch=0,
                grid=(rows_p // tm_eff,),
                in_specs=[
                    pl.BlockSpec((tm_eff, H), lambda i: (i, 0)),    # context tile
                    pl.BlockSpec((tm_eff, H), lambda i: (i, 0)),    # residual tile
                    pl.BlockSpec((H, H), lambda i: (0, 0), **res),  # weight (resident)
                    pl.BlockSpec((1, H), lambda i: (0, 0), **res),  # bias
                    pl.BlockSpec((1, H), lambda i: (0, 0), **res),  # gamma
                    pl.BlockSpec((1, H), lambda i: (0, 0), **res),  # beta
                ],
                out_specs=pl.BlockSpec((tm_eff, H), lambda i: (i, 0)),
            ),
            compiler_params=pltpu.CompilerParams(
                dimension_semantics=("parallel",),
                vmem_limit_bytes=_vmem_limit(
                    need + (0 if single_buffer_weights else w_bytes))),
        )

    try:
        out = build(True)(h2p, x2p, w_t, b2, g2, be2)
    except Exception:   # Buffered(1) unsupported in this build -> default buffering
        out = build(False)(h2p, x2p, w_t, b2, g2, be2)
    return out[:rows]


# ------------------------------ BertAttention --------------------------------


def pack_bert_attention_params(params, compute_dtype=None):
    """One-time packing of torch-layout [out, in] weights into kernel layout.

    Hoisted out of the forward so the transposes/concats are not paid per step.
    compute_dtype (e.g. jnp.bfloat16) casts the MXU weight operands; softmax and
    LayerNorm math stays f32 either way.
    """
    w_qkv = jnp.concatenate([params["wq"].T, params["wk"].T, params["wv"].T], axis=1)
    wo_t = params["wo"].T
    if compute_dtype is not None:
        w_qkv = w_qkv.astype(compute_dtype)
        wo_t = wo_t.astype(compute_dtype)
    H = wo_t.shape[0]
    return {
        "w_qkv": w_qkv,                                                      # [H, 3H]
        "b_qkv": jnp.concatenate([params["bq"], params["bk"],
                                  params["bv"]]).reshape(1, 3 * H),
        "wo_t": wo_t,                                                        # [H, H]
        "bo": params["bo"].reshape(1, H),
        "gamma": params["gamma"].reshape(1, H),
        "beta": params["beta"].reshape(1, H),
    }


def bert_attention(hidden_states, attention_mask, packed, *, num_heads, tm=512,
                   compute_dtype=None):
    """hidden_states: [B, S, H]; attention_mask: additive, reshapeable to [B,1,1,S].

    packed: output of pack_bert_attention_params.  tm: row tile for the two
    projection kernels (512 default for v6e/v7x; use 128-256 on v5e).
    compute_dtype: optionally cast activations fed to the MXU (e.g. bf16).
    """
    B, S, H = hidden_states.shape
    if H % num_heads:
        raise ValueError("hidden size must be a multiple of num_heads")
    d = H // num_heads
    rows = B * S
    if compute_dtype is not None:
        hidden_states = hidden_states.astype(compute_dtype)
    h2 = hidden_states.reshape(rows, H)

    # ---- BertSelfAttention: fused QKV projection (3 lane-dense (rows,H) outputs) ----
    q2, k2, v2 = _qkv_proj(h2, packed["w_qkv"], packed["b_qkv"], tm=tm)

    # ---- per-(batch, head-group) SDPA, context written straight in (B,S,H) ----
    # TODO(synk): attention_mask must be reshapeable to [B,1,1,S]; per-query
    # [B,1,S,S] masks are not supported by this kernel.
    mask3 = attention_mask.reshape(B, 1, S).astype(jnp.float32)
    ctx = _attention_core(q2.reshape(B, S, H), k2.reshape(B, S, H),
                          v2.reshape(B, S, H), mask3,
                          scale=1.0 / math.sqrt(d), num_heads=num_heads)

    # ---- BertSelfOutput: dense + residual + LayerNorm ----
    out = _self_output(ctx.reshape(rows, H), h2, packed["wo_t"], packed["bo"],
                       packed["gamma"], packed["beta"], tm=tm)
    return out.reshape(B, S, H)


# ------------------------------ pure-JAX ref ----------------------------------


def _reference(hidden_states, attention_mask, params, *, num_heads, eps=1e-12):
    B, S, H = hidden_states.shape
    d = H // num_heads

    def lin(x, w, b):
        return jnp.einsum("bsh,oh->bso", x, w) + b

    def heads(x):
        return x.reshape(B, S, num_heads, d).transpose(0, 2, 1, 3)

    q = heads(lin(hidden_states, params["wq"], params["bq"]))
    k = heads(lin(hidden_states, params["wk"], params["bk"]))
    v = heads(lin(hidden_states, params["wv"], params["bv"]))
    scores = jnp.einsum("bhqd,bhkd->bhqk", q, k) / math.sqrt(d)
    scores = jnp.clip(scores, -10000.0, 10000.0)
    scores = scores + attention_mask.reshape(B, 1, 1, S)
    probs = jax.nn.softmax(scores.astype(jnp.float32), axis=-1).astype(scores.dtype)
    ctx = jnp.einsum("bhqk,bhkd->bhqd", probs, v)
    ctx = ctx.transpose(0, 2, 1, 3).reshape(B, S, H)
    y = lin(ctx, params["wo"], params["bo"]) + hidden_states
    u = y.mean(-1, keepdims=True)
    s = ((y - u) ** 2).mean(-1, keepdims=True)
    n = (y - u) / jnp.sqrt(s + eps)
    return params["gamma"] * n + params["beta"]


if __name__ == "__main__":
    B, S, H, nH = 2, 8, 32, 4
    key = jax.random.PRNGKey(0)
    ks = jax.random.split(key, 8)

    hidden_states = jax.random.normal(ks[0], (B, S, H), dtype=jnp.float32)
    params = {
        "wq": jax.random.normal(ks[1], (H, H), dtype=jnp.float32) * 0.02,
        "bq": jax.random.normal(ks[2], (H,), dtype=jnp.float32) * 0.02,
        "wk": jax.random.normal(ks[3], (H, H), dtype=jnp.float32) * 0.02,
        "bk": jnp.zeros((H,), dtype=jnp.float32),
        "wv": jax.random.normal(ks[4], (H, H), dtype=jnp.float32) * 0.02,
        "bv": jnp.zeros((H,), dtype=jnp.float32),
        "wo": jax.random.normal(ks[5], (H, H), dtype=jnp.float32) * 0.02,
        "bo": jax.random.normal(ks[6], (H,), dtype=jnp.float32) * 0.02,
        "gamma": jnp.ones((H,), dtype=jnp.float32),
        "beta": jnp.zeros((H,), dtype=jnp.float32),
    }

    # HF-style additive mask: last 2 key positions of batch 1 are masked out.
    lengths = jnp.array([S, S - 2])
    pos = jnp.arange(S)[None, :]
    attention_mask = jnp.where(pos < lengths[:, None], 0.0, -10000.0)
    attention_mask = attention_mask.reshape(B, 1, 1, S).astype(jnp.float32)

    packed = pack_bert_attention_params(params)     # one-time weight packing
    out = bert_attention(hidden_states, attention_mask, packed, num_heads=nH)
    out = jax.block_until_ready(out)

    ref = _reference(hidden_states, attention_mask, params, num_heads=nH)
    assert out.shape == (B, S, H)
    assert jnp.allclose(out, ref, atol=1e-4, rtol=1e-4), "mismatch vs reference"
    print("KERNEL_OK")
</pallas_src>

<mosaic_0001>
module attributes {stable_mosaic.version = 11 : i64} {
  func.func @_qkv_kernel(%arg0: i32, %arg1: memref<16x32xf32, #tpu.memory_space<vmem>>, %arg2: memref<32x96xf32, #tpu.memory_space<vmem>>, %arg3: memref<1x96xf32, #tpu.memory_space<vmem>>, %arg4: memref<16x32xf32, #tpu.memory_space<vmem>>, %arg5: memref<16x32xf32, #tpu.memory_space<vmem>>, %arg6: memref<16x32xf32, #tpu.memory_space<vmem>>) attributes {dimension_semantics = [#tpu.dimension_semantics<parallel>], iteration_bounds = array<i64: 1>, scalar_prefetch = 0 : i64, scratch_operands = 0 : i64, tpu.core_type = #tpu.core_type<tc>, window_params = [{transform_indices = @transform_0, window_bounds = array<i64: 16, 32>}, {pipeline_mode = #tpu.pipeline_mode<synchronous>, transform_indices = @transform_1, window_bounds = array<i64: 32, 96>}, {pipeline_mode = #tpu.pipeline_mode<synchronous>, transform_indices = @transform_2, window_bounds = array<i64: 1, 96>}, {transform_indices = @transform_3, window_bounds = array<i64: 16, 32>}, {transform_indices = @transform_4, window_bounds = array<i64: 16, 32>}, {transform_indices = @transform_5, window_bounds = array<i64: 16, 32>}]} {
    %c0 = arith.constant 0 : index
    %c0_0 = arith.constant 0 : index
    %0 = vector.load %arg1[%c0, %c0_0] : memref<16x32xf32, #tpu.memory_space<vmem>>, vector<16x32xf32>
    %c0_1 = arith.constant 0 : index
    %c0_2 = arith.constant 0 : index
    %1 = vector.load %arg2[%c0_1, %c0_2] : memref<32x96xf32, #tpu.memory_space<vmem>>, vector<32x96xf32>
    %cst = arith.constant dense<0.000000e+00> : vector<16x96xf32>
    %2 = tpu.matmul %0, %1, %cst {dimension_numbers = #tpu.dot_dimension_numbers<[1], [0], [0], [1], [0, 0, 1, 1], [], []>} : vector<16x32xf32>, vector<32x96xf32>, vector<16x96xf32> -> vector<16x96xf32>
    %c0_3 = arith.constant 0 : index
    %c0_4 = arith.constant 0 : index
    %3 = vector.load %arg3[%c0_3, %c0_4] : memref<1x96xf32, #tpu.memory_space<vmem>>, vector<1x96xf32>
    %4 = vector.broadcast %3 : vector<1x96xf32> to vector<16x96xf32>
    %5 = arith.addf %2, %4 : vector<16x96xf32>
    %6 = vector.extract_strided_slice %5 {offsets = [0, 0], sizes = [16, 32], strides = [1, 1]} : vector<16x96xf32> to vector<16x32xf32>
    %c0_5 = arith.constant 0 : index
    %c0_6 = arith.constant 0 : index
    %7 = vector.load %arg4[%c0_5, %c0_6] : memref<16x32xf32, #tpu.memory_space<vmem>>, vector<16x32xf32>
    tpu.vector_store %arg4[%c0_5, %c0_6], %6 {strides = array<i32>} : memref<16x32xf32, #tpu.memory_space<vmem>>, vector<16x32xf32>,
    %8 = vector.extract_strided_slice %5 {offsets = [0, 32], sizes = [16, 32], strides = [1, 1]} : vector<16x96xf32> to vector<16x32xf32>
    %c0_7 = arith.constant 0 : index
    %c0_8 = arith.constant 0 : index
    %9 = vector.load %arg5[%c0_7, %c0_8] : memref<16x32xf32, #tpu.memory_space<vmem>>, vector<16x32xf32>
    tpu.vector_store %arg5[%c0_7, %c0_8], %8 {strides = array<i32>} : memref<16x32xf32, #tpu.memory_space<vmem>>, vector<16x32xf32>,
    %10 = vector.extract_strided_slice %5 {offsets = [0, 64], sizes = [16, 32], strides = [1, 1]} : vector<16x96xf32> to vector<16x32xf32>
    %c0_9 = arith.constant 0 : index
    %c0_10 = arith.constant 0 : index
    %11 = vector.load %arg6[%c0_9, %c0_10] : memref<16x32xf32, #tpu.memory_space<vmem>>, vector<16x32xf32>
    tpu.vector_store %arg6[%c0_9, %c0_10], %10 {strides = array<i32>} : memref<16x32xf32, #tpu.memory_space<vmem>>, vector<16x32xf32>,
    return
  }
  func.func @transform_0(%arg0: i32) -> (i32, i32) {
    %c0_i32 = arith.constant 0 : i32
    %c0_i32_0 = arith.constant 0 : i32
    return %arg0, %c0_i32 : i32, i32
  }
  func.func @transform_1(%arg0: i32) -> (i32, i32) {
    %c0_i32 = arith.constant 0 : i32
    %c0_i32_0 = arith.constant 0 : i32
    %c0_i32_1 = arith.constant 0 : i32
    return %c0_i32, %c0_i32_0 : i32, i32
  }
  func.func @transform_2(%arg0: i32) -> (i32, i32) {
    %c0_i32 = arith.constant 0 : i32
    %c0_i32_0 = arith.constant 0 : i32
    %c0_i32_1 = arith.constant 0 : i32
    return %c0_i32, %c0_i32_0 : i32, i32
  }
  func.func @transform_3(%arg0: i32) -> (i32, i32) {
    %c0_i32 = arith.constant 0 : i32
    %c0_i32_0 = arith.constant 0 : i32
    return %arg0, %c0_i32 : i32, i32
  }
  func.func @transform_4(%arg0: i32) -> (i32, i32) {
    %c0_i32 = arith.constant 0 : i32
    %c0_i32_0 = arith.constant 0 : i32
    return %arg0, %c0_i32 : i32, i32
  }
  func.func @transform_5(%arg0: i32) -> (i32, i32) {
    %c0_i32 = arith.constant 0 : i32
    %c0_i32_0 = arith.constant 0 : i32
    return %arg0, %c0_i32 : i32, i32
  }
}

module attributes {stable_mosaic.version = 11 : i64} {
  func.func @_qkv_kernel(%arg0: i32, %arg1: memref<16x32xf32, #tpu.memory_space<vmem>>, %arg2: memref<32x96xf32, #tpu.memory_space<vmem>>, %arg3: memref<1x96xf32, #tpu.memory_space<vmem>>, %arg4: memref<16x32xf32, #tpu.memory_space<vmem>>, %arg5: memref<16x32xf32, #tpu.memory_space<vmem>>, %arg6: memref<16x32xf32, #tpu.memory_space<vmem>>) attributes {dimension_semantics = [#tpu.dimension_semantics<parallel>], iteration_bounds = array<i64: 1>, scalar_prefetch = 0 : i64, scratch_operands = 0 : i64, tpu.core_type = #tpu.core_type<tc>, window_params = [{transform_indices = @transform_0, window_bounds = array<i64: 16, 32>}, {pipeline_mode = #tpu.pipeline_mode<synchronous>, transform_indices = @transform_1, window_bounds = array<i64: 32, 96>}, {pipeline_mode = #tpu.pipeline_mode<synchronous>, transform_indices = @transform_2, window_bounds = array<i64: 1, 96>}, {transform_indices = @transform_3, window_bounds = array<i64: 16, 32>}, {transform_indices = @transform_4, window_bounds = array<i64: 16, 32>}, {transform_indices = @transform_5, window_bounds = array<i64: 16, 32>}]} {
    %c0 = arith.constant 0 : index
    %c0_0 = arith.constant 0 : index
    %0 = vector.load %arg1[%c0, %c0_0] : memref<16x32xf32, #tpu.memory_space<vmem>>, vector<16x32xf32>
    %c0_1 = arith.constant 0 : index
    %c0_2 = arith.constant 0 : index
    %1 = vector.load %arg2[%c0_1, %c0_2] : memref<32x96xf32, #tpu.memory_space<vmem>>, vector<32x96xf32>
    %cst = arith.constant dense<0.000000e+00> : vector<16x96xf32>
    %2 = tpu.matmul %0, %1, %cst {dimension_numbers = #tpu.dot_dimension_numbers<[1], [0], [0], [1], [0, 0, 1, 1], [], []>} : vector<16x32xf32>, vector<32x96xf32>, vector<16x96xf32> -> vector<16x96xf32>
    %c0_3 = arith.constant 0 : index
    %c0_4 = arith.constant 0 : index
    %3 = vector.load %arg3[%c0_3, %c0_4] : memref<1x96xf32, #tpu.memory_space<vmem>>, vector<1x96xf32>
    %4 = vector.broadcast %3 : vector<1x96xf32> to vector<16x96xf32>
    %5 = arith.addf %2, %4 : vector<16x96xf32>
    %6 = vector.extract_strided_slice %5 {offsets = [0, 0], sizes = [16, 32], strides = [1, 1]} : vector<16x96xf32> to vector<16x32xf32>
    %c0_5 = arith.constant 0 : index
    %c0_6 = arith.constant 0 : index
    %7 = vector.load %arg4[%c0_5, %c0_6] : memref<16x32xf32, #tpu.memory_space<vmem>>, vector<16x32xf32>
    tpu.vector_store %arg4[%c0_5, %c0_6], %6 {strides = array<i32>} : memref<16x32xf32, #tpu.memory_space<vmem>>, vector<16x32xf32>,
    %8 = vector.extract_strided_slice %5 {offsets = [0, 32], sizes = [16, 32], strides = [1, 1]} : vector<16x96xf32> to vector<16x32xf32>
    %c0_7 = arith.constant 0 : index
    %c0_8 = arith.constant 0 : index
    %9 = vector.load %arg5[%c0_7, %c0_8] : memref<16x32xf32, #tpu.memory_space<vmem>>, vector<16x32xf32>
    tpu.vector_store %arg5[%c0_7, %c0_8], %8 {strides = array<i32>} : memref<16x32xf32, #tpu.memory_space<vmem>>, vector<16x32xf32>,
    %10 = vector.extract_strided_slice %5 {offsets = [0, 64], sizes = [16, 32], strides = [1, 1]} : vector<16x96xf32> to vector<16x32xf32>
    %c0_9 = arith.constant 0 : index
    %c0_10 = arith.constant 0 : index
    %11 = vector.load %arg6[%c0_9, %c0_10] : memref<16x32xf32, #tpu.memory_space<vmem>>, vector<16x32xf32>
    tpu.vector_store %arg6[%c0_9, %c0_10], %10 {strides = array<i32>} : memref<16x32xf32, #tpu.memory_space<vmem>>, vector<16x32xf32>,
    return
  }
  func.func @transform_0(%arg0: i32) -> (i32, i32) {
    %c0_i32 = arith.constant 0 : i32
    %c0_i32_0 = arith.constant 0 : i32
    return %arg0, %c0_i32 : i32, i32
  }
  func.func @transform_1(%arg0: i32) -> (i32, i32) {
    %c0_i32 = arith.constant 0 : i32
    %c0_i32_0 = arith.constant 0 : i32
    %c0_i32_1 = arith.constant 0 : i32
    return %c0_i32, %c0_i32_0 : i32, i32
  }
  func.func @transform_2(%arg0: i32) -> (i32, i32) {
    %c0_i32 = arith.constant 0 : i32
    %c0_i32_0 = arith.constant 0 : i32
    %c0_i32_1 = arith.constant 0 : i32
    return %c0_i32, %c0_i32_0 : i32, i32
  }
  func.func @transform_3(%arg0: i32) -> (i32, i32) {
    %c0_i32 = arith.constant 0 : i32
    %c0_i32_0 = arith.constant 0 : i32
    return %arg0, %c0_i32 : i32, i32
  }
  func.func @transform_4(%arg0: i32) -> (i32, i32) {
    %c0_i32 = arith.constant 0 : i32
    %c0_i32_0 = arith.constant 0 : i32
    return %arg0, %c0_i32 : i32, i32
  }
  func.func @transform_5(%arg0: i32) -> (i32, i32) {
    %c0_i32 = arith.constant 0 : i32
    %c0_i32_0 = arith.constant 0 : i32
    return %arg0, %c0_i32 : i32, i32
  }
}

</mosaic_0001>

<llo_original>
// kernel: tpu_custom_call.1
$region0: #{tpu_custom_call.1}
  #allocation0 [shape = 'u32[]', space=smem, size = 0x4, offset = 0x4, fixed_abs, tag = 'smem constant byte address 0x4 - core index']
  #allocation1 [shape = 'u32[144,128]{1,0:T(1,128)}', space=vmem, size = 0x12000, scoped, tag = 'internal scratch']
  %s0 = inlined_call_operand.hbm [shape: f32[16,32], index: 0, kind: input, shape index: {}]
  %s1 = inlined_call_operand.hbm [shape: f32[32,96], index: 1, kind: input, shape index: {}]
  %s2 = inlined_call_operand.vmem [shape: f32[1,96], index: 2, kind: input, shape index: {}]
  %s3 = inlined_call_operand.hbm [shape: f32[16,32], index: 3, kind: output, shape index: {0}]
  %s4 = inlined_call_operand.hbm [shape: f32[16,32], index: 4, kind: output, shape index: {1}]
  %s5 = inlined_call_operand.hbm [shape: f32[16,32], index: 5, kind: output, shape index: {2}]
  %6 = xla_tuple %s3, %s4, %s5
  %s7 = sld [smem:[#allocation0]]
  $region46: #{tpu_custom_call.1} parent=0
    _
  %s9 = ssub.s32 1, %s7
  %s10 = scalar_select 0, %s9, %s7
  $region1: #{tpu_custom_call.1} parent=0
    #allocation2 [shape = 'u8[8192]{0}', space=vmem, size = 0x2000, scoped, tag = 'input window, operand 0, single buffered']
    #allocation3 [shape = 's32[1]{0}', space=sflag, size = 0x4, scoped, tag = 'scoped memory for tpu_custom_call.1']
    #allocation4 [shape = 's32[1]{0}', space=sflag, size = 0x4, scoped, tag = 'scoped memory for tpu_custom_call.1']
    #allocation5 [shape = 'u8[16384]{0}', space=vmem, size = 0x4000, scoped, tag = 'input window, operand 1, single buffered']
    #allocation6 [shape = 's32[1]{0}', space=sflag, size = 0x4, scoped, tag = 'scoped memory for tpu_custom_call.1']
    #allocation7 [shape = 'u8[8192]{0}', space=vmem, size = 0x2000, scoped, tag = 'output window, operand 0, single buffered']
    #allocation8 [shape = 'u8[8192]{0}', space=vmem, size = 0x2000, scoped, tag = 'output window, operand 1, single buffered']
    #allocation9 [shape = 's32[1]{0}', space=sflag, size = 0x4, scoped, tag = 'scoped memory for tpu_custom_call.1']
    #allocation10 [shape = 'u8[8192]{0}', space=vmem, size = 0x2000, scoped, tag = 'output window, operand 2, single buffered']
    %11 = vsyncpa [#allocation3], 0
    %12 = vsyncpa [#allocation6], 0
    %13 = vsyncpa [#allocation4], 0
    %14 = vsyncpa [#allocation9], 0
    // Predicated region
    $region2: #{tpu_custom_call.1} parent=1 // pred_check
      _
    $region3: #{tpu_custom_call.1} parent=1 // pred_check_branch
      %16 = sbr.rel (0) target = $region5
    $region4: #{tpu_custom_call.1} parent=1 // pred_region
      %s18 = ssub.s32 256, 256
      %19 = vsyncadd [#allocation3], %s18
      %s20 = sshll.u32 [#allocation2], 4
      %s21 = int_to_ptr.vmem [resolvable:$true] %s20
      %26 = dma.hbm_to_vmem [thread:$0]  %s0, 256, %s21, [#allocation3], 128, 128, 8
    $region5: #{tpu_custom_call.1} parent=1 // pred_fallthru
      _
    // Predicated region
    $region6: #{tpu_custom_call.1} parent=1 // pred_check
      _
    $region7: #{tpu_custom_call.1} parent=1 // pred_check_branch
      %28 = sbr.rel (0) target = $region9
    $region8: #{tpu_custom_call.1} parent=1 // pred_region
      %s30 = ssub.s32 512, 512
      %31 = vsyncadd [#allocation6], %s30
      %s32 = sshll.u32 [#allocation5], 4
      %s33 = int_to_ptr.vmem [resolvable:$true] %s32
      %38 = dma.hbm_to_vmem [thread:$0]  %s1, 512, %s33, [#allocation6], 128, 128, 8
    $region9: #{tpu_custom_call.1} parent=1 // pred_fallthru
      _
    // Predicated region
    $region10: #{tpu_custom_call.1} parent=1 // pred_check
      _
    $region11: #{tpu_custom_call.1} parent=1 // pred_check_branch
      %40 = sbr.rel (0) target = $region13
    $region12: #{tpu_custom_call.1} parent=1 // pred_region
      _
    $region13: #{tpu_custom_call.1} parent=1 // pred_fallthru
      _
    // Predicated region
    $region14: #{tpu_custom_call.1} parent=1 // pred_check
      _
    $region15: #{tpu_custom_call.1} parent=1 // pred_check_branch
      %42 = sbr.rel (0) target = $region17
    $region16: #{tpu_custom_call.1} parent=1 // pred_region
      %43 = dma.done [#allocation3], 256
    $region17: #{tpu_custom_call.1} parent=1 // pred_fallthru
      _
    // Predicated region
    $region18: #{tpu_custom_call.1} parent=1 // pred_check
      _
    $region19: #{tpu_custom_call.1} parent=1 // pred_check_branch
      %45 = sbr.rel (0) target = $region21
    $region20: #{tpu_custom_call.1} parent=1 // pred_region
      %46 = dma.done [#allocation6], 512
    $region21: #{tpu_custom_call.1} parent=1 // pred_fallthru
      _
    %v47 = vld [vmem:[#allocation2] sm:$0xff]
    %v48 = vld [vmem:[#allocation2 + $0x8] sm:$0xff]
    %v49 = vld [vmem:[#allocation5] sm:$0xff]
    %v50 = vld [vmem:[#allocation5 + $0x8] sm:$0xff]
    %v51 = vld [vmem:[#allocation5 + $0x10] sm:$0xff]
    %v52 = vld [vmem:[#allocation5 + $0x18] sm:$0xff]
    %v53 = vld [vmem:[%s2] sm:$0x1]
    %v55 = vlaneseq
    %v56 = vshrl.u32 %v55, 7
    %v57 = vsub.s32 0, %v56
    %v58 = vrot.slane %v53, %v57
    %vm60 = vcmask 261120
    %v62 = vsel %vm60, %v47, 0
    %v65 = vsel %vm60, %v48, 0
    %67 = vmatprep.subr.mxu0 0.0
    %68 = vmatpush1.msra.mxu0 0.0
    %69 = vmatprep.subr.mxu0 0.0
    %70 = vmatpush1.msra.mxu0 0.0
    %71 = vmatprep.subr.mxu0 0.0
    %72 = vmatpush1.msra.mxu0 0.0
    %73 = vmatprep.subr.mxu0 0.0
    %74 = vmatpush1.msra.mxu0 0.0
    %75 = vmatprep.subr.mxu0 0.0
    %76 = vmatpush1.msra.mxu0 0.0
    %77 = vmatprep.subr.mxu0 0.0
    %78 = vmatpush1.msra.mxu0 0.0
    %79 = vmatprep.subr.mxu0 0.0
    %80 = vmatpush1.msra.mxu0 0.0
    %81 = vmatprep.subr.mxu0 0.0
    %82 = vmatpush1.msra.mxu0 0.0
    %83 = vmatprep.subr.mxu0 0.0
    %84 = vmatpush1.msra.mxu0 0.0
    %85 = vmatprep.subr.mxu0 0.0
    %86 = vmatpush1.msra.mxu0 0.0
    %87 = vmatprep.subr.mxu0 0.0
    %88 = vmatpush1.msra.mxu0 0.0
    %89 = vmatprep.subr.mxu0 0.0
    %90 = vmatpush1.msra.mxu0 0.0
    %91 = vmatprep.subr.mxu0 0.0
    %92 = vmatpush1.msra.mxu0 %v52
    %93 = vmatprep.subr.mxu0 0.0
    %94 = vmatpush1.msra.mxu0 %v51
    %95 = vmatprep.subr.mxu0 0.0
    %96 = vmatpush1.msra.mxu0 %v50
    %97 = vmatprep.subr.mxu0 0.0
    %98 = vmatpush1.msra.mxu0 %v49
    %99 = vmatprep.subr.mxu0 0.0
    %100 = vmatpush2.msra.mxu0 0.0
    %101 = vmatprep.subr.mxu0 0.0
    %102 = vmatpush2.msra.mxu0 0.0
    %103 = vmatprep.subr.mxu0 0.0
    %104 = vmatpush2.msra.mxu0 0.0
    %105 = vmatprep.subr.mxu0 0.0
    %106 = vmatpush2.msra.mxu0 0.0
    %107 = vmatprep.subr.mxu0 0.0
    %108 = vmatpush2.msra.mxu0 0.0
    %109 = vmatprep.subr.mxu0 0.0
    %110 = vmatpush2.msra.mxu0 0.0
    %111 = vmatprep.subr.mxu0 0.0
    %112 = vmatpush2.msra.mxu0 0.0
    %113 = vmatprep.subr.mxu0 0.0
    %114 = vmatpush2.msra.mxu0 0.0
    %115 = vmatprep.subr.mxu0 0.0
    %116 = vmatpush2.msra.mxu0 0.0
    %117 = vmatprep.subr.mxu0 0.0
    %118 = vmatpush2.msra.mxu0 0.0
    %119 = vmatprep.subr.mxu0 0.0
    %120 = vmatpush2.msra.mxu0 0.0
    %121 = vmatprep.subr.mxu0 0.0
    %122 = vmatpush2.msra.mxu0 0.0
    %123 = vmatprep.subr.mxu0 0.0
    %124 = vmatpush2.msra.mxu0 0.0
    %125 = vmatprep.subr.mxu0 0.0
    %126 = vmatpush2.msra.mxu0 0.0
    %127 = vmatprep.subr.mxu0 0.0
    %128 = vmatpush2.msra.mxu0 0.0
    %129 = vmatprep.subr.mxu0 0.0
    %130 = vmatpush2.msra.mxu0 0.0
    %131 = vmatprep.mubr.f32.mxu0 0.0
    %132 = vmatmul.mubr.f32.gmra.mxu0 %v62
    %v133 = vpop.f32.mrf.mxu0
    %v134 = vadd.f32 %v58, %v133
    %v135 = vpop.f32.mrf.mxu0
    %136 = vmatprep.mubr.f32.mxu0 0.0
    %137 = vmatmul.mubr.f32.gmra.mxu0 %v65
    %v138 = vpop.f32.mrf.mxu0
    %v139 = vadd.f32 %v58, %v138
    %v140 = vpop.f32.mrf.mxu0
    %141 = vdwg.mxu0
    %142 = vst.msk [vmem:[#allocation7] sm:$0xff] %vm60, %v134
    %143 = vst.msk [vmem:[#allocation7 + $0x8] sm:$0xff] %vm60, %v139
    %146 = vrot.lane.b32.xlu0 %v134, 96
    %v147 = vpop.permute.xlu0 %146
    %148 = vrot.lane.b32.xlu0 %v139, 96
    %v149 = vpop.permute.xlu0 %148
    %152 = vst.msk [vmem:[#allocation8] sm:$0xff] %vm60, %v147
    %153 = vst.msk [vmem:[#allocation8 + $0x8] sm:$0xff] %vm60, %v149
    %154 = vrot.lane.b32.xlu0 %v134, 64
    %v155 = vpop.permute.xlu0 %154
    %156 = vrot.lane.b32.xlu0 %v139, 64
    %v157 = vpop.permute.xlu0 %156
    %160 = vst.msk [vmem:[#allocation10] sm:$0xff] %vm60, %v155
    %161 = vst.msk [vmem:[#allocation10 + $0x8] sm:$0xff] %vm60, %v157
    // Predicated region
    $region22: #{tpu_custom_call.1} parent=1 // pred_check
      _
    $region23: #{tpu_custom_call.1} parent=1 // pred_check_branch
      %163 = sbr.rel (0) target = $region25
    $region24: #{tpu_custom_call.1} parent=1 // pred_region
      %s165 = ssub.s32 256, 256
      %166 = vsyncadd [#allocation4], %s165
      %s167 = sshll.u32 [#allocation7], 4
      %s168 = int_to_ptr.vmem [resolvable:$true] %s167
      %173 = dma.vmem_to_hbm [thread:$0]  %s168, 256, %s3, [#allocation4], 128, 128, 8
    $region25: #{tpu_custom_call.1} parent=1 // pred_fallthru
      _
    // Predicated region
    $region26: #{tpu_custom_call.1} parent=1 // pred_check
      _
    $region27: #{tpu_custom_call.1} parent=1 // pred_check_branch
      %175 = sbr.rel (0) target = $region29
    $region28: #{tpu_custom_call.1} parent=1 // pred_region
      %s177 = ssub.s32 256, 256
      %178 = vsyncadd [#allocation9], %s177
      %s179 = sshll.u32 [#allocation8], 4
      %s180 = int_to_ptr.vmem [resolvable:$true] %s179
      %185 = dma.vmem_to_hbm [thread:$0]  %s180, 256, %s4, [#allocation9], 128, 128, 8
    $region29: #{tpu_custom_call.1} parent=1 // pred_fallthru
      _
    // Predicated region
    $region30: #{tpu_custom_call.1} parent=1 // pred_check
      _
    $region31: #{tpu_custom_call.1} parent=1 // pred_check_branch
      %187 = sbr.rel (0) target = $region33
    $region32: #{tpu_custom_call.1} parent=1 // pred_region
      %s189 = ssub.s32 256, 256
      %190 = vsyncadd [#allocation9], %s189
      %s191 = sshll.u32 [#allocation10], 4
      %s192 = int_to_ptr.vmem [resolvable:$true] %s191
      %197 = dma.vmem_to_hbm [thread:$0]  %s192, 256, %s5, [#allocation9], 128, 128, 8
    $region33: #{tpu_custom_call.1} parent=1 // pred_fallthru
      _
    // Predicated region
    $region34: #{tpu_custom_call.1} parent=1 // pred_check
      _
    $region35: #{tpu_custom_call.1} parent=1 // pred_check_branch
      %199 = sbr.rel (0) target = $region37
    $region36: #{tpu_custom_call.1} parent=1 // pred_region
      %200 = dma.done [#allocation4], 256
    $region37: #{tpu_custom_call.1} parent=1 // pred_fallthru
      _
    // Predicated region
    $region38: #{tpu_custom_call.1} parent=1 // pred_check
      _
    $region39: #{tpu_custom_call.1} parent=1 // pred_check_branch
      %202 = sbr.rel (0) target = $region41
    $region40: #{tpu_custom_call.1} parent=1 // pred_region
      %203 = dma.done [#allocation9], 256
    $region41: #{tpu_custom_call.1} parent=1 // pred_fallthru
      _
    // Predicated region
    $region42: #{tpu_custom_call.1} parent=1 // pred_check
      _
    $region43: #{tpu_custom_call.1} parent=1 // pred_check_branch
      %205 = sbr.rel (0) target = $region45
    $region44: #{tpu_custom_call.1} parent=1 // pred_region
      %206 = dma.done [#allocation9], 256
    $region45: #{tpu_custom_call.1} parent=1 // pred_fallthru
      _
    %207 = vsyncpa [#allocation3], 1
    %208 = vsyncpa [#allocation6], 1
    %209 = vsyncpa [#allocation4], 1
    %210 = vsyncpa [#allocation9], 1

// kernel: tpu_custom_call.1
$region0: #{tpu_custom_call.1}
  #allocation0 [shape = 'u32[]', space=smem, size = 0x4, offset = 0x4, fixed_abs, tag = 'smem constant byte address 0x4 - core index']
  #allocation1 [shape = 'u32[144,128]{1,0:T(1,128)}', space=vmem, size = 0x12000, scoped, tag = 'internal scratch']
  %s0 = inlined_call_operand.hbm [shape: f32[16,32], index: 0, kind: input, shape index: {}]
  %s1 = inlined_call_operand.hbm [shape: f32[32,96], index: 1, kind: input, shape index: {}]
  %s2 = inlined_call_operand.vmem [shape: f32[1,96], index: 2, kind: input, shape index: {}]
  %s3 = inlined_call_operand.hbm [shape: f32[16,32], index: 3, kind: output, shape index: {0}]
  %s4 = inlined_call_operand.hbm [shape: f32[16,32], index: 4, kind: output, shape index: {1}]
  %s5 = inlined_call_operand.hbm [shape: f32[16,32], index: 5, kind: output, shape index: {2}]
  %6 = xla_tuple %s3, %s4, %s5
  %s7 = sld [smem:[#allocation0]]
  $region46: #{tpu_custom_call.1} parent=0
    _
  %s9 = ssub.s32 1, %s7
  %s10 = scalar_select 0, %s9, %s7
  $region1: #{tpu_custom_call.1} parent=0
    #allocation2 [shape = 'u8[8192]{0}', space=vmem, size = 0x2000, scoped, tag = 'input window, operand 0, single buffered']
    #allocation3 [shape = 's32[1]{0}', space=sflag, size = 0x4, scoped, tag = 'scoped memory for tpu_custom_call.1']
    #allocation4 [shape = 's32[1]{0}', space=sflag, size = 0x4, scoped, tag = 'scoped memory for tpu_custom_call.1']
    #allocation5 [shape = 'u8[16384]{0}', space=vmem, size = 0x4000, scoped, tag = 'input window, operand 1, single buffered']
    #allocation6 [shape = 's32[1]{0}', space=sflag, size = 0x4, scoped, tag = 'scoped memory for tpu_custom_call.1']
    #allocation7 [shape = 'u8[8192]{0}', space=vmem, size = 0x2000, scoped, tag = 'output window, operand 0, single buffered']
    #allocation8 [shape = 'u8[8192]{0}', space=vmem, size = 0x2000, scoped, tag = 'output window, operand 1, single buffered']
    #allocation9 [shape = 's32[1]{0}', space=sflag, size = 0x4, scoped, tag = 'scoped memory for tpu_custom_call.1']
    #allocation10 [shape = 'u8[8192]{0}', space=vmem, size = 0x2000, scoped, tag = 'output window, operand 2, single buffered']
    %11 = vsyncpa [#allocation3], 0
    %12 = vsyncpa [#allocation6], 0
    %13 = vsyncpa [#allocation4], 0
    %14 = vsyncpa [#allocation9], 0
    // Predicated region
    $region2: #{tpu_custom_call.1} parent=1 // pred_check
      _
    $region3: #{tpu_custom_call.1} parent=1 // pred_check_branch
      %16 = sbr.rel (0) target = $region5
    $region4: #{tpu_custom_call.1} parent=1 // pred_region
      %s18 = ssub.s32 256, 256
      %19 = vsyncadd [#allocation3], %s18
      %s20 = sshll.u32 [#allocation2], 4
      %s21 = int_to_ptr.vmem [resolvable:$true] %s20
      %26 = dma.hbm_to_vmem [thread:$0]  %s0, 256, %s21, [#allocation3], 128, 128, 8
    $region5: #{tpu_custom_call.1} parent=1 // pred_fallthru
      _
    // Predicated region
    $region6: #{tpu_custom_call.1} parent=1 // pred_check
      _
    $region7: #{tpu_custom_call.1} parent=1 // pred_check_branch
      %28 = sbr.rel (0) target = $region9
    $region8: #{tpu_custom_call.1} parent=1 // pred_region
      %s30 = ssub.s32 512, 512
      %31 = vsyncadd [#allocation6], %s30
      %s32 = sshll.u32 [#allocation5], 4
      %s33 = int_to_ptr.vmem [resolvable:$true] %s32
      %38 = dma.hbm_to_vmem [thread:$0]  %s1, 512, %s33, [#allocation6], 128, 128, 8
    $region9: #{tpu_custom_call.1} parent=1 // pred_fallthru
      _
    // Predicated region
    $region10: #{tpu_custom_call.1} parent=1 // pred_check
      _
    $region11: #{tpu_custom_call.1} parent=1 // pred_check_branch
      %40 = sbr.rel (0) target = $region13
    $region12: #{tpu_custom_call.1} parent=1 // pred_region
      _
    $region13: #{tpu_custom_call.1} parent=1 // pred_fallthru
      _
    // Predicated region
    $region14: #{tpu_custom_call.1} parent=1 // pred_check
      _
    $region15: #{tpu_custom_call.1} parent=1 // pred_check_branch
      %42 = sbr.rel (0) target = $region17
    $region16: #{tpu_custom_call.1} parent=1 // pred_region
      %43 = dma.done [#allocation3], 256
    $region17: #{tpu_custom_call.1} parent=1 // pred_fallthru
      _
    // Predicated region
    $region18: #{tpu_custom_call.1} parent=1 // pred_check
      _
    $region19: #{tpu_custom_call.1} parent=1 // pred_check_branch
      %45 = sbr.rel (0) target = $region21
    $region20: #{tpu_custom_call.1} parent=1 // pred_region
      %46 = dma.done [#allocation6], 512
    $region21: #{tpu_custom_call.1} parent=1 // pred_fallthru
      _
    %v47 = vld [vmem:[#allocation2] sm:$0xff]
    %v48 = vld [vmem:[#allocation2 + $0x8] sm:$0xff]
    %v49 = vld [vmem:[#allocation5] sm:$0xff]
    %v50 = vld [vmem:[#allocation5 + $0x8] sm:$0xff]
    %v51 = vld [vmem:[#allocation5 + $0x10] sm:$0xff]
    %v52 = vld [vmem:[#allocation5 + $0x18] sm:$0xff]
    %v53 = vld [vmem:[%s2] sm:$0x1]
    %v55 = vlaneseq
    %v56 = vshrl.u32 %v55, 7
    %v57 = vsub.s32 0, %v56
    %v58 = vrot.slane %v53, %v57
    %vm60 = vcmask 261120
    %v62 = vsel %vm60, %v47, 0
    %v65 = vsel %vm60, %v48, 0
    %67 = vmatprep.subr.mxu0 0.0
    %68 = vmatpush1.msra.mxu0 0.0
    %69 = vmatprep.subr.mxu0 0.0
    %70 = vmatpush1.msra.mxu0 0.0
    %71 = vmatprep.subr.mxu0 0.0
    %72 = vmatpush1.msra.mxu0 0.0
    %73 = vmatprep.subr.mxu0 0.0
    %74 = vmatpush1.msra.mxu0 0.0
    %75 = vmatprep.subr.mxu0 0.0
    %76 = vmatpush1.msra.mxu0 0.0
    %77 = vmatprep.subr.mxu0 0.0
    %78 = vmatpush1.msra.mxu0 0.0
    %79 = vmatprep.subr.mxu0 0.0
    %80 = vmatpush1.msra.mxu0 0.0
    %81 = vmatprep.subr.mxu0 0.0
    %82 = vmatpush1.msra.mxu0 0.0
    %83 = vmatprep.subr.mxu0 0.0
    %84 = vmatpush1.msra.mxu0 0.0
    %85 = vmatprep.subr.mxu0 0.0
    %86 = vmatpush1.msra.mxu0 0.0
    %87 = vmatprep.subr.mxu0 0.0
    %88 = vmatpush1.msra.mxu0 0.0
    %89 = vmatprep.subr.mxu0 0.0
    %90 = vmatpush1.msra.mxu0 0.0
    %91 = vmatprep.subr.mxu0 0.0
    %92 = vmatpush1.msra.mxu0 %v52
    %93 = vmatprep.subr.mxu0 0.0
    %94 = vmatpush1.msra.mxu0 %v51
    %95 = vmatprep.subr.mxu0 0.0
    %96 = vmatpush1.msra.mxu0 %v50
    %97 = vmatprep.subr.mxu0 0.0
    %98 = vmatpush1.msra.mxu0 %v49
    %99 = vmatprep.subr.mxu0 0.0
    %100 = vmatpush2.msra.mxu0 0.0
    %101 = vmatprep.subr.mxu0 0.0
    %102 = vmatpush2.msra.mxu0 0.0
    %103 = vmatprep.subr.mxu0 0.0
    %104 = vmatpush2.msra.mxu0 0.0
    %105 = vmatprep.subr.mxu0 0.0
    %106 = vmatpush2.msra.mxu0 0.0
    %107 = vmatprep.subr.mxu0 0.0
    %108 = vmatpush2.msra.mxu0 0.0
    %109 = vmatprep.subr.mxu0 0.0
    %110 = vmatpush2.msra.mxu0 0.0
    %111 = vmatprep.subr.mxu0 0.0
    %112 = vmatpush2.msra.mxu0 0.0
    %113 = vmatprep.subr.mxu0 0.0
    %114 = vmatpush2.msra.mxu0 0.0
    %115 = vmatprep.subr.mxu0 0.0
    %116 = vmatpush2.msra.mxu0 0.0
    %117 = vmatprep.subr.mxu0 0.0
    %118 = vmatpush2.msra.mxu0 0.0
    %119 = vmatprep.subr.mxu0 0.0
    %120 = vmatpush2.msra.mxu0 0.0
    %121 = vmatprep.subr.mxu0 0.0
    %122 = vmatpush2.msra.mxu0 0.0
    %123 = vmatprep.subr.mxu0 0.0
    %124 = vmatpush2.msra.mxu0 0.0
    %125 = vmatprep.subr.mxu0 0.0
    %126 = vmatpush2.msra.mxu0 0.0
    %127 = vmatprep.subr.mxu0 0.0
    %128 = vmatpush2.msra.mxu0 0.0
    %129 = vmatprep.subr.mxu0 0.0
    %130 = vmatpush2.msra.mxu0 0.0
    %131 = vmatprep.mubr.f32.mxu0 0.0
    %132 = vmatmul.mubr.f32.gmra.mxu0 %v62
    %v133 = vpop.f32.mrf.mxu0
    %v134 = vadd.f32 %v58, %v133
    %v135 = vpop.f32.mrf.mxu0
    %136 = vmatprep.mubr.f32.mxu0 0.0
    %137 = vmatmul.mubr.f32.gmra.mxu0 %v65
    %v138 = vpop.f32.mrf.mxu0
    %v139 = vadd.f32 %v58, %v138
    %v140 = vpop.f32.mrf.mxu0
    %141 = vdwg.mxu0
    %142 = vst.msk [vmem:[#allocation7] sm:$0xff] %vm60, %v134
    %143 = vst.msk [vmem:[#allocation7 + $0x8] sm:$0xff] %vm60, %v139
    %146 = vrot.lane.b32.xlu0 %v134, 96
    %v147 = vpop.permute.xlu0 %146
    %148 = vrot.lane.b32.xlu0 %v139, 96
    %v149 = vpop.permute.xlu0 %148
    %152 = vst.msk [vmem:[#allocation8] sm:$0xff] %vm60, %v147
    %153 = vst.msk [vmem:[#allocation8 + $0x8] sm:$0xff] %vm60, %v149
    %154 = vrot.lane.b32.xlu0 %v134, 64
    %v155 = vpop.permute.xlu0 %154
    %156 = vrot.lane.b32.xlu0 %v139, 64
    %v157 = vpop.permute.xlu0 %156
    %160 = vst.msk [vmem:[#allocation10] sm:$0xff] %vm60, %v155
    %161 = vst.msk [vmem:[#allocation10 + $0x8] sm:$0xff] %vm60, %v157
    // Predicated region
    $region22: #{tpu_custom_call.1} parent=1 // pred_check
      _
    $region23: #{tpu_custom_call.1} parent=1 // pred_check_branch
      %163 = sbr.rel (0) target = $region25
    $region24: #{tpu_custom_call.1} parent=1 // pred_region
      %s165 = ssub.s32 256, 256
      %166 = vsyncadd [#allocation4], %s165
      %s167 = sshll.u32 [#allocation7], 4
      %s168 = int_to_ptr.vmem [resolvable:$true] %s167
      %173 = dma.vmem_to_hbm [thread:$0]  %s168, 256, %s3, [#allocation4], 128, 128, 8
    $region25: #{tpu_custom_call.1} parent=1 // pred_fallthru
      _
    // Predicated region
    $region26: #{tpu_custom_call.1} parent=1 // pred_check
      _
    $region27: #{tpu_custom_call.1} parent=1 // pred_check_branch
      %175 = sbr.rel (0) target = $region29
    $region28: #{tpu_custom_call.1} parent=1 // pred_region
      %s177 = ssub.s32 256, 256
      %178 = vsyncadd [#allocation9], %s177
      %s179 = sshll.u32 [#allocation8], 4
      %s180 = int_to_ptr.vmem [resolvable:$true] %s179
      %185 = dma.vmem_to_hbm [thread:$0]  %s180, 256, %s4, [#allocation9], 128, 128, 8
    $region29: #{tpu_custom_call.1} parent=1 // pred_fallthru
      _
    // Predicated region
    $region30: #{tpu_custom_call.1} parent=1 // pred_check
      _
    $region31: #{tpu_custom_call.1} parent=1 // pred_check_branch
      %187 = sbr.rel (0) target = $region33
    $region32: #{tpu_custom_call.1} parent=1 // pred_region
      %s189 = ssub.s32 256, 256
      %190 = vsyncadd [#allocation9], %s189
      %s191 = sshll.u32 [#allocation10], 4
      %s192 = int_to_ptr.vmem [resolvable:$true] %s191
      %197 = dma.vmem_to_hbm [thread:$0]  %s192, 256, %s5, [#allocation9], 128, 128, 8
    $region33: #{tpu_custom_call.1} parent=1 // pred_fallthru
      _
    // Predicated region
    $region34: #{tpu_custom_call.1} parent=1 // pred_check
      _
    $region35: #{tpu_custom_call.1} parent=1 // pred_check_branch
      %199 = sbr.rel (0) target = $region37
    $region36: #{tpu_custom_call.1} parent=1 // pred_region
      %200 = dma.done [#allocation4], 256
    $region37: #{tpu_custom_call.1} parent=1 // pred_fallthru
      _
    // Predicated region
    $region38: #{tpu_custom_call.1} parent=1 // pred_check
      _
    $region39: #{tpu_custom_call.1} parent=1 // pred_check_branch
      %202 = sbr.rel (0) target = $region41
    $region40: #{tpu_custom_call.1} parent=1 // pred_region
      %203 = dma.done [#allocation9], 256
    $region41: #{tpu_custom_call.1} parent=1 // pred_fallthru
      _
    // Predicated region
    $region42: #{tpu_custom_call.1} parent=1 // pred_check
      _
    $region43: #{tpu_custom_call.1} parent=1 // pred_check_branch
      %205 = sbr.rel (0) target = $region45
    $region44: #{tpu_custom_call.1} parent=1 // pred_region
      %206 = dma.done [#allocation9], 256
    $region45: #{tpu_custom_call.1} parent=1 // pred_fallthru
      _
    %207 = vsyncpa [#allocation3], 1
    %208 = vsyncpa [#allocation6], 1
    %209 = vsyncpa [#allocation4], 1
    %210 = vsyncpa [#allocation9], 1

</llo_original>
